<compile_context>
chip_gen: v7x
topology: tpu7x:2x2x1
jax: 0.10.0
libtpu: 0.0.40
codegen_flags: <defaults>
</compile_context>

<pallas_src>
import jax
import jax.numpy as jnp
from jax.experimental import pallas as pl
from jax.experimental.pallas import tpu as pltpu

N, C, W = 10, 16, 16
ROWS = N * C                 # 160
W_UP = 2 * W                 # 32  -> upsample_nearest(size=32)
W_OUT = W_UP + 3             # 35  -> pad(1,1) then max_pool1d(k=2, s=1, pad=1)
P_DROP = 0.8
KEEP_SCALE = 1.0 / (1.0 - P_DROP)   # 5.0


def model_kernel(x_ref, rand_ref, o_ref):
    x = x_ref[...]                   # (160, 16) f32
    u = rand_ref[0]                  # dropout uniforms, (160, 16)
    t = rand_ref[1]                  # rand_like values, (160, 16)

    # z1 = Dropout(p=0.8)(x); h1 = z1 * t1   -- fused into one select.
    h1 = jnp.where(u >= P_DROP, x * (KEEP_SCALE * t), 0.0)

    # k1 = softmax(upsample_nearest(h1, 32), dim=-1).
    # Every h1 value appears exactly twice in j1, so
    #   softmax(j1)[w] = exp(h1[w//2] - m) / (2 * sum(exp(h1 - m)))
    # -> compute the softmax on the 16-wide tensor, upsample afterwards.
    m = jnp.max(h1, axis=-1, keepdims=True)
    e = jnp.exp(h1 - m)
    s = jnp.sum(e, axis=-1, keepdims=True)
    kh = e / (2.0 * s)                                   # (160, 16)

    # Nearest-neighbour x2 upsample along lanes as one tiny MXU matmul against
    # a 0/1 selection matrix built in-kernel (no extra HBM->VMEM DMA).
    src = jax.lax.broadcasted_iota(jnp.int32, (W, W_UP), 0)
    dst = jax.lax.broadcasted_iota(jnp.int32, (W, W_UP), 1)
    up = (src == (dst >> 1)).astype(jnp.float32)         # (16, 32)
    k1 = jnp.dot(kh, up, preferred_element_type=jnp.float32)   # (160, 32)

    # TODO(synk): l1 = F.batch_norm(h1, track_running_stats=True) is an invalid
    # functional call in PyTorch (missing running_mean/running_var) and l1 is
    # unused by the return value, so it is intentionally omitted.

    # m1 = pad(k1, (1,1)) along W ; out = max_pool1d(m1, k=2, s=1, padding=1)
    #   out[l] = max(m1[l-1], m1[l])   (pool padding = -inf; since k1 > 0 the
    #   zero pad columns dominate the -inf boundaries)
    # = elementwise max of k1 shifted right by 2 and by 1 inside a 35-wide row.
    # Pure lane data movement (concatenate) -- no MXU, no shift matrices.
    zc1 = jnp.zeros((ROWS, 1), jnp.float32)
    zc2 = jnp.zeros((ROWS, 2), jnp.float32)
    p = jnp.concatenate([zc2, k1, zc1], axis=-1)         # p[l] = k1[l-2]
    q = jnp.concatenate([zc1, k1, zc2], axis=-1)         # q[l] = k1[l-1]
    o_ref[...] = jnp.maximum(p, q)


@jax.jit
def model_forward(x, key):
    # x: (10, 16, 16) float32
    x2 = x.reshape(ROWS, W)
    # One combined uniform draw: row-block 0 = dropout mask, row-block 1 = rand_like.
    rand = jax.random.uniform(key, (2, ROWS, W), dtype=jnp.float32)

    out2 = pl.pallas_call(
        model_kernel,
        out_shape=jax.ShapeDtypeStruct((ROWS, W_OUT), jnp.float32),
        in_specs=[
            pl.BlockSpec(memory_space=pltpu.MemorySpace.VMEM),   # x    (160, 16)
            pl.BlockSpec(memory_space=pltpu.MemorySpace.VMEM),   # rand (2, 160, 16)
        ],
        out_specs=pl.BlockSpec(memory_space=pltpu.MemorySpace.VMEM),
    )(x2, rand)

    out = out2.reshape(N, C, W_OUT)
    # F.pad(k1, (1,1, 1,1, 1,2)) also pads C by (1,1) and N by (1,2); those rows
    # of m1 are all-zero and stay all-zero through max_pool1d, so padding after
    # pooling the valid rows is exactly equivalent.
    return jnp.pad(out, ((1, 2), (1, 1), (0, 0)))


if __name__ == "__main__":
    key = jax.random.PRNGKey(0)
    kx, kr = jax.random.split(key)
    x = jax.random.normal(kx, (N, C, W), dtype=jnp.float32)
    out = jax.block_until_ready(model_forward(x, kr))
    assert out.shape == (13, 18, 35), out.shape
    assert out.dtype == jnp.float32
    print("KERNEL_OK")
</pallas_src>

<mosaic_0001>
module attributes {stable_mosaic.version = 11 : i64} {
  func.func @model_kernel(%arg0: memref<160x16xf32, #tpu.memory_space<vmem>>, %arg1: memref<2x160x16xf32, #tpu.memory_space<vmem>>, %arg2: memref<160x35xf32, #tpu.memory_space<vmem>>) attributes {dimension_semantics = [], scalar_prefetch = 0 : i64, scratch_operands = 0 : i64, tpu.core_type = #tpu.core_type<tc>} {
    %c0 = arith.constant 0 : index
    %c0_0 = arith.constant 0 : index
    %0 = vector.load %arg0[%c0, %c0_0] : memref<160x16xf32, #tpu.memory_space<vmem>>, vector<160x16xf32>
    %c0_1 = arith.constant 0 : index
    %c0_2 = arith.constant 0 : index
    %c0_3 = arith.constant 0 : index
    %1 = vector.load %arg1[%c0_1, %c0_2, %c0_3] : memref<2x160x16xf32, #tpu.memory_space<vmem>>, vector<1x160x16xf32>
    %2 = vector.shape_cast %1 : vector<1x160x16xf32> to vector<160x16xf32>
    %c1 = arith.constant 1 : index
    %c0_4 = arith.constant 0 : index
    %c0_5 = arith.constant 0 : index
    %3 = vector.load %arg1[%c1, %c0_4, %c0_5] : memref<2x160x16xf32, #tpu.memory_space<vmem>>, vector<1x160x16xf32>
    %4 = vector.shape_cast %3 : vector<1x160x16xf32> to vector<160x16xf32>
    %cst = arith.constant 8.000000e-01 : f32
    %5 = vector.broadcast %cst : f32 to vector<160x16xf32>
    %6 = arith.cmpf oge, %2, %5 : vector<160x16xf32>
    %cst_6 = arith.constant 5.000000e+00 : f32
    %7 = vector.broadcast %cst_6 : f32 to vector<160x16xf32>
    %8 = arith.mulf %7, %4 : vector<160x16xf32>
    %9 = arith.mulf %0, %8 : vector<160x16xf32>
    %cst_7 = arith.constant 0.000000e+00 : f32
    %10 = vector.broadcast %cst_7 : f32 to vector<160x16xf32>
    %11 = arith.select %6, %9, %10 : vector<160x16xi1>, vector<160x16xf32>
    %cst_8 = arith.constant dense<0xFF800000> : vector<160xf32>
    %12 = vector.multi_reduction <maximumf>, %11, %cst_8 [1] : vector<160x16xf32> to vector<160xf32>
    %13 = vector.shape_cast %12 : vector<160xf32> to vector<160x1xf32>
    %14 = vector.broadcast %13 : vector<160x1xf32> to vector<160x16xf32>
    %15 = arith.subf %11, %14 : vector<160x16xf32>
    %16 = math.exp %15 : vector<160x16xf32>
    %cst_9 = arith.constant dense<0.000000e+00> : vector<160xf32>
    %17 = vector.multi_reduction <add>, %16, %cst_9 [1] : vector<160x16xf32> to vector<160xf32>
    %18 = vector.shape_cast %17 : vector<160xf32> to vector<160x1xf32>
    %cst_10 = arith.constant 2.000000e+00 : f32
    %19 = vector.broadcast %cst_10 : f32 to vector<160x1xf32>
    %20 = arith.mulf %19, %18 : vector<160x1xf32>
    %21 = vector.broadcast %20 : vector<160x1xf32> to vector<160x16xf32>
    %22 = arith.divf %16, %21 : vector<160x16xf32>
    %23 = tpu.iota {dimensions = array<i32: 0>} : vector<16x32xi32>
    %24 = tpu.iota {dimensions = array<i32: 1>} : vector<16x32xi32>
    %c1_i32 = arith.constant 1 : i32
    %25 = vector.broadcast %c1_i32 : i32 to vector<16x32xi32>
    %26 = arith.shrsi %24, %25 : vector<16x32xi32>
    %27 = arith.cmpi eq, %23, %26 : vector<16x32xi32>
    %28 = arith.extui %27 : vector<16x32xi1> to vector<16x32xi32>
    %29 = arith.sitofp %28 : vector<16x32xi32> to vector<16x32xf32>
    %cst_11 = arith.constant dense<0.000000e+00> : vector<160x32xf32>
    %30 = tpu.matmul %22, %29, %cst_11 {dimension_numbers = #tpu.dot_dimension_numbers<[1], [0], [0], [1], [0, 0, 1, 1], [], []>} : vector<160x16xf32>, vector<16x32xf32>, vector<160x32xf32> -> vector<160x32xf32>
    %cst_12 = arith.constant 0.000000e+00 : f32
    %31 = vector.broadcast %cst_12 : f32 to vector<160x1xf32>
    %cst_13 = arith.constant 0.000000e+00 : f32
    %32 = vector.broadcast %cst_13 : f32 to vector<160x2xf32>
    %33 = tpu.concatenate %32, %30, %31 in 1 : vector<160x2xf32>, vector<160x32xf32>, vector<160x1xf32> -> vector<160x35xf32>
    %34 = tpu.concatenate %31, %30, %32 in 1 : vector<160x1xf32>, vector<160x32xf32>, vector<160x2xf32> -> vector<160x35xf32>
    %35 = arith.maximumf %33, %34 : vector<160x35xf32>
    %c0_14 = arith.constant 0 : index
    %c0_15 = arith.constant 0 : index
    %36 = vector.load %arg2[%c0_14, %c0_15] : memref<160x35xf32, #tpu.memory_space<vmem>>, vector<160x35xf32>
    tpu.vector_store %arg2[%c0_14, %c0_15], %35 {strides = array<i32>} : memref<160x35xf32, #tpu.memory_space<vmem>>, vector<160x35xf32>,
    return
  }
}

</mosaic_0001>

<llo_original>
// kernel: model_forward.1
$region0: #{model_forward.1}
  #allocation0 [shape = 'u32[]', space=smem, size = 0x4, offset = 0x4, fixed_abs, tag = 'smem constant byte address 0x4 - core index']
  #allocation1 [shape = 'u32[144,128]{1,0:T(1,128)}', space=vmem, size = 0x12000, scoped, tag = 'internal scratch']
  %s0 = inlined_call_operand.vmem [shape: f32[160,16], index: 0, kind: input, shape index: {}]
  %s1 = inlined_call_operand.vmem [shape: f32[2,160,16], index: 1, kind: input, shape index: {}]
  %s2 = inlined_call_operand.vmem [shape: f32[160,35], index: 2, kind: output, shape index: {}]
  %s3 = sld [smem:[#allocation0]]
  $region18: #{model_forward.1} parent=0
    _
  %s5 = ssub.s32 1, %s3
  %s6 = scalar_select 0, %s5, %s3
  // Predicated region
  $region2: #{model_forward.1} parent=0 // pred_check
    _
  $region3: #{model_forward.1} parent=0 // pred_check_branch
    %8 = sbr.rel (0) target = $region5
  $region4: #{model_forward.1} parent=0 // pred_region
    _
  $region5: #{model_forward.1} parent=0 // pred_fallthru
    _
  // Predicated region
  $region6: #{model_forward.1} parent=0 // pred_check
    _
  $region7: #{model_forward.1} parent=0 // pred_check_branch
    %10 = sbr.rel (0) target = $region9
  $region8: #{model_forward.1} parent=0 // pred_region
    _
  $region9: #{model_forward.1} parent=0 // pred_fallthru
    _
  %v11 = vld [vmem:[%s0] sm:$0xff]
  %v12 = vld [vmem:[%s0 + $0x8] sm:$0xff]
  %v13 = vld [vmem:[%s0 + $0x10] sm:$0xff]
  %v14 = vld [vmem:[%s0 + $0x18] sm:$0xff]
  %v15 = vld [vmem:[%s0 + $0x20] sm:$0xff]
  %v16 = vld [vmem:[%s0 + $0x28] sm:$0xff]
  %v17 = vld [vmem:[%s0 + $0x30] sm:$0xff]
  %v18 = vld [vmem:[%s0 + $0x38] sm:$0xff]
  %v19 = vld [vmem:[%s0 + $0x40] sm:$0xff]
  %v20 = vld [vmem:[%s0 + $0x48] sm:$0xff]
  %v21 = vld [vmem:[%s0 + $0x50] sm:$0xff]
  %v22 = vld [vmem:[%s0 + $0x58] sm:$0xff]
  %v23 = vld [vmem:[%s0 + $0x60] sm:$0xff]
  %v24 = vld [vmem:[%s0 + $0x68] sm:$0xff]
  %v25 = vld [vmem:[%s0 + $0x70] sm:$0xff]
  %v26 = vld [vmem:[%s0 + $0x78] sm:$0xff]
  %v27 = vld [vmem:[%s0 + $0x80] sm:$0xff]
  %v28 = vld [vmem:[%s0 + $0x88] sm:$0xff]
  %v29 = vld [vmem:[%s0 + $0x90] sm:$0xff]
  %v30 = vld [vmem:[%s0 + $0x98] sm:$0xff]
  %v31 = vld [vmem:[%s1] sm:$0xff]
  %v32 = vld [vmem:[%s1 + $0x8] sm:$0xff]
  %v33 = vld [vmem:[%s1 + $0x10] sm:$0xff]
  %v34 = vld [vmem:[%s1 + $0x18] sm:$0xff]
  %v35 = vld [vmem:[%s1 + $0x20] sm:$0xff]
  %v36 = vld [vmem:[%s1 + $0x28] sm:$0xff]
  %v37 = vld [vmem:[%s1 + $0x30] sm:$0xff]
  %v38 = vld [vmem:[%s1 + $0x38] sm:$0xff]
  %v39 = vld [vmem:[%s1 + $0x40] sm:$0xff]
  %v40 = vld [vmem:[%s1 + $0x48] sm:$0xff]
  %v41 = vld [vmem:[%s1 + $0x50] sm:$0xff]
  %v42 = vld [vmem:[%s1 + $0x58] sm:$0xff]
  %v43 = vld [vmem:[%s1 + $0x60] sm:$0xff]
  %v44 = vld [vmem:[%s1 + $0x68] sm:$0xff]
  %v45 = vld [vmem:[%s1 + $0x70] sm:$0xff]
  %v46 = vld [vmem:[%s1 + $0x78] sm:$0xff]
  %v47 = vld [vmem:[%s1 + $0x80] sm:$0xff]
  %v48 = vld [vmem:[%s1 + $0x88] sm:$0xff]
  %v49 = vld [vmem:[%s1 + $0x90] sm:$0xff]
  %v50 = vld [vmem:[%s1 + $0x98] sm:$0xff]
  %s51 = scalar_lea.vmem %s1, 160
  %v52 = vld [vmem:[%s51] sm:$0xff]
  %v53 = vld [vmem:[%s51 + $0x8] sm:$0xff]
  %v54 = vld [vmem:[%s51 + $0x10] sm:$0xff]
  %v55 = vld [vmem:[%s51 + $0x18] sm:$0xff]
  %v56 = vld [vmem:[%s51 + $0x20] sm:$0xff]
  %v57 = vld [vmem:[%s51 + $0x28] sm:$0xff]
  %v58 = vld [vmem:[%s51 + $0x30] sm:$0xff]
  %v59 = vld [vmem:[%s51 + $0x38] sm:$0xff]
  %v60 = vld [vmem:[%s51 + $0x40] sm:$0xff]
  %v61 = vld [vmem:[%s51 + $0x48] sm:$0xff]
  %v62 = vld [vmem:[%s51 + $0x50] sm:$0xff]
  %v63 = vld [vmem:[%s51 + $0x58] sm:$0xff]
  %v64 = vld [vmem:[%s51 + $0x60] sm:$0xff]
  %v65 = vld [vmem:[%s51 + $0x68] sm:$0xff]
  %v66 = vld [vmem:[%s51 + $0x70] sm:$0xff]
  %v67 = vld [vmem:[%s51 + $0x78] sm:$0xff]
  %v68 = vld [vmem:[%s51 + $0x80] sm:$0xff]
  %v69 = vld [vmem:[%s51 + $0x88] sm:$0xff]
  %v70 = vld [vmem:[%s51 + $0x90] sm:$0xff]
  %v71 = vld [vmem:[%s51 + $0x98] sm:$0xff]
  %vm72 = vcmp.ge.f32.partialorder %v31, 0.8
  %vm73 = vcmp.ge.f32.partialorder %v32, 0.8
  %vm74 = vcmp.ge.f32.partialorder %v33, 0.8
  %vm75 = vcmp.ge.f32.partialorder %v34, 0.8
  %vm76 = vcmp.ge.f32.partialorder %v35, 0.8
  %vm77 = vcmp.ge.f32.partialorder %v36, 0.8
  %vm78 = vcmp.ge.f32.partialorder %v37, 0.8
  %vm79 = vcmp.ge.f32.partialorder %v38, 0.8
  %vm80 = vcmp.ge.f32.partialorder %v39, 0.8
  %vm81 = vcmp.ge.f32.partialorder %v40, 0.8
  %vm82 = vcmp.ge.f32.partialorder %v41, 0.8
  %vm83 = vcmp.ge.f32.partialorder %v42, 0.8
  %vm84 = vcmp.ge.f32.partialorder %v43, 0.8
  %vm85 = vcmp.ge.f32.partialorder %v44, 0.8
  %vm86 = vcmp.ge.f32.partialorder %v45, 0.8
  %vm87 = vcmp.ge.f32.partialorder %v46, 0.8
  %vm88 = vcmp.ge.f32.partialorder %v47, 0.8
  %vm89 = vcmp.ge.f32.partialorder %v48, 0.8
  %vm90 = vcmp.ge.f32.partialorder %v49, 0.8
  %vm91 = vcmp.ge.f32.partialorder %v50, 0.8
  %v92 = vmul.f32 %v52, 5.0
  %v93 = vmul.f32 %v53, 5.0
  %v94 = vmul.f32 %v54, 5.0
  %v95 = vmul.f32 %v55, 5.0
  %v96 = vmul.f32 %v56, 5.0
  %v97 = vmul.f32 %v57, 5.0
  %v98 = vmul.f32 %v58, 5.0
  %v99 = vmul.f32 %v59, 5.0
  %v100 = vmul.f32 %v60, 5.0
  %v101 = vmul.f32 %v61, 5.0
  %v102 = vmul.f32 %v62, 5.0
  %v103 = vmul.f32 %v63, 5.0
  %v104 = vmul.f32 %v64, 5.0
  %v105 = vmul.f32 %v65, 5.0
  %v106 = vmul.f32 %v66, 5.0
  %v107 = vmul.f32 %v67, 5.0
  %v108 = vmul.f32 %v68, 5.0
  %v109 = vmul.f32 %v69, 5.0
  %v110 = vmul.f32 %v70, 5.0
  %v111 = vmul.f32 %v71, 5.0
  %v112 = vmul.f32 %v11, %v92
  %v113 = vmul.f32 %v12, %v93
  %v114 = vmul.f32 %v13, %v94
  %v115 = vmul.f32 %v14, %v95
  %v116 = vmul.f32 %v15, %v96
  %v117 = vmul.f32 %v16, %v97
  %v118 = vmul.f32 %v17, %v98
  %v119 = vmul.f32 %v18, %v99
  %v120 = vmul.f32 %v19, %v100
  %v121 = vmul.f32 %v20, %v101
  %v122 = vmul.f32 %v21, %v102
  %v123 = vmul.f32 %v22, %v103
  %v124 = vmul.f32 %v23, %v104
  %v125 = vmul.f32 %v24, %v105
  %v126 = vmul.f32 %v25, %v106
  %v127 = vmul.f32 %v26, %v107
  %v128 = vmul.f32 %v27, %v108
  %v129 = vmul.f32 %v28, %v109
  %v130 = vmul.f32 %v29, %v110
  %v131 = vmul.f32 %v30, %v111
  %v132 = vsel %vm72, %v112, 0.0
  %v133 = vsel %vm73, %v113, 0.0
  %v134 = vsel %vm74, %v114, 0.0
  %v135 = vsel %vm75, %v115, 0.0
  %v136 = vsel %vm76, %v116, 0.0
  %v137 = vsel %vm77, %v117, 0.0
  %v138 = vsel %vm78, %v118, 0.0
  %v139 = vsel %vm79, %v119, 0.0
  %v140 = vsel %vm80, %v120, 0.0
  %v141 = vsel %vm81, %v121, 0.0
  %v142 = vsel %vm82, %v122, 0.0
  %v143 = vsel %vm83, %v123, 0.0
  %v144 = vsel %vm84, %v124, 0.0
  %v145 = vsel %vm85, %v125, 0.0
  %v146 = vsel %vm86, %v126, 0.0
  %v147 = vsel %vm87, %v127, 0.0
  %v148 = vsel %vm88, %v128, 0.0
  %v149 = vsel %vm89, %v129, 0.0
  %v150 = vsel %vm90, %v130, 0.0
  %v151 = vsel %vm91, %v131, 0.0
  %vm152 = vcmask 130048
  %v153 = vsel %vm152, %v132, -inf
  %154 = vmax.xlane.f32.xlu0 %v153
  %v155 = vpop.xlane.xlu0 %154
  %v156 = vsel %vm152, %v133, -inf
  %157 = vmax.xlane.f32.xlu0 %v156
  %v158 = vpop.xlane.xlu0 %157
  %v159 = vsel %vm152, %v134, -inf
  %160 = vmax.xlane.f32.xlu0 %v159
  %v161 = vpop.xlane.xlu0 %160
  %v162 = vsel %vm152, %v135, -inf
  %163 = vmax.xlane.f32.xlu0 %v162
  %v164 = vpop.xlane.xlu0 %163
  %v165 = vsel %vm152, %v136, -inf
  %166 = vmax.xlane.f32.xlu0 %v165
  %v167 = vpop.xlane.xlu0 %166
  %v168 = vsel %vm152, %v137, -inf
  %169 = vmax.xlane.f32.xlu0 %v168
  %v170 = vpop.xlane.xlu0 %169
  %v171 = vsel %vm152, %v138, -inf
  %172 = vmax.xlane.f32.xlu0 %v171
  %v173 = vpop.xlane.xlu0 %172
  %v174 = vsel %vm152, %v139, -inf
  %175 = vmax.xlane.f32.xlu0 %v174
  %v176 = vpop.xlane.xlu0 %175
  %v177 = vsel %vm152, %v140, -inf
  %178 = vmax.xlane.f32.xlu0 %v177
  %v179 = vpop.xlane.xlu0 %178
  %v180 = vsel %vm152, %v141, -inf
  %181 = vmax.xlane.f32.xlu0 %v180
  %v182 = vpop.xlane.xlu0 %181
  %v183 = vsel %vm152, %v142, -inf
  %184 = vmax.xlane.f32.xlu0 %v183
  %v185 = vpop.xlane.xlu0 %184
  %v186 = vsel %vm152, %v143, -inf
  %187 = vmax.xlane.f32.xlu0 %v186
  %v188 = vpop.xlane.xlu0 %187
  %v189 = vsel %vm152, %v144, -inf
  %190 = vmax.xlane.f32.xlu0 %v189
  %v191 = vpop.xlane.xlu0 %190
  %v192 = vsel %vm152, %v145, -inf
  %193 = vmax.xlane.f32.xlu0 %v192
  %v194 = vpop.xlane.xlu0 %193
  %v195 = vsel %vm152, %v146, -inf
  %196 = vmax.xlane.f32.xlu0 %v195
  %v197 = vpop.xlane.xlu0 %196
  %v198 = vsel %vm152, %v147, -inf
  %199 = vmax.xlane.f32.xlu0 %v198
  %v200 = vpop.xlane.xlu0 %199
  %v201 = vsel %vm152, %v148, -inf
  %202 = vmax.xlane.f32.xlu0 %v201
  %v203 = vpop.xlane.xlu0 %202
  %v204 = vsel %vm152, %v149, -inf
  %205 = vmax.xlane.f32.xlu0 %v204
  %v206 = vpop.xlane.xlu0 %205
  %v207 = vsel %vm152, %v150, -inf
  %208 = vmax.xlane.f32.xlu0 %v207
  %v209 = vpop.xlane.xlu0 %208
  %v210 = vsel %vm152, %v151, -inf
  %211 = vmax.xlane.f32.xlu0 %v210
  %v212 = vpop.xlane.xlu0 %211
  %v213 = vsub.f32 %v132, %v155
  %v214 = vsub.f32 %v133, %v158
  %v215 = vsub.f32 %v134, %v161
  %v216 = vsub.f32 %v135, %v164
  %v217 = vsub.f32 %v136, %v167
  %v218 = vsub.f32 %v137, %v170
  %v219 = vsub.f32 %v138, %v173
  %v220 = vsub.f32 %v139, %v176
  %v221 = vsub.f32 %v140, %v179
  %v222 = vsub.f32 %v141, %v182
  %v223 = vsub.f32 %v142, %v185
  %v224 = vsub.f32 %v143, %v188
  %v225 = vsub.f32 %v144, %v191
  %v226 = vsub.f32 %v145, %v194
  %v227 = vsub.f32 %v146, %v197
  %v228 = vsub.f32 %v147, %v200
  %v229 = vsub.f32 %v148, %v203
  %v230 = vsub.f32 %v149, %v206
  %v231 = vsub.f32 %v150, %v209
  %v232 = vsub.f32 %v151, %v212
  %v233 = vmul.f32 %v213, 1.442695
  %v234 = vpow.pop %v233
  %v235 = vmul.f32 %v214, 1.442695
  %v236 = vpow.pop %v235
  %v237 = vmul.f32 %v215, 1.442695
  %v238 = vpow.pop %v237
  %v239 = vmul.f32 %v216, 1.442695
  %v240 = vpow.pop %v239
  %v241 = vmul.f32 %v217, 1.442695
  %v242 = vpow.pop %v241
  %v243 = vmul.f32 %v218, 1.442695
  %v244 = vpow.pop %v243
  %v245 = vmul.f32 %v219, 1.442695
  %v246 = vpow.pop %v245
  %v247 = vmul.f32 %v220, 1.442695
  %v248 = vpow.pop %v247
  %v249 = vmul.f32 %v221, 1.442695
  %v250 = vpow.pop %v249
  %v251 = vmul.f32 %v222, 1.442695
  %v252 = vpow.pop %v251
  %v253 = vmul.f32 %v223, 1.442695
  %v254 = vpow.pop %v253
  %v255 = vmul.f32 %v224, 1.442695
  %v256 = vpow.pop %v255
  %v257 = vmul.f32 %v225, 1.442695
  %v258 = vpow.pop %v257
  %v259 = vmul.f32 %v226, 1.442695
  %v260 = vpow.pop %v259
  %v261 = vmul.f32 %v227, 1.442695
  %v262 = vpow.pop %v261
  %v263 = vmul.f32 %v228, 1.442695
  %v264 = vpow.pop %v263
  %v265 = vmul.f32 %v229, 1.442695
  %v266 = vpow.pop %v265
  %v267 = vmul.f32 %v230, 1.442695
  %v268 = vpow.pop %v267
  %v269 = vmul.f32 %v231, 1.442695
  %v270 = vpow.pop %v269
  %v271 = vmul.f32 %v232, 1.442695
  %v272 = vpow.pop %v271
  %v273 = vsel %vm152, %v234, 0.0
  %274 = vadd.xlane.f32.xlu0 %v273
  %v275 = vpop.xlane.xlu0 %274
  %v276 = vsel %vm152, %v236, 0.0
  %277 = vadd.xlane.f32.xlu0 %v276
  %v278 = vpop.xlane.xlu0 %277
  %v279 = vsel %vm152, %v238, 0.0
  %280 = vadd.xlane.f32.xlu0 %v279
  %v281 = vpop.xlane.xlu0 %280
  %v282 = vsel %vm152, %v240, 0.0
  %283 = vadd.xlane.f32.xlu0 %v282
  %v284 = vpop.xlane.xlu0 %283
  %v285 = vsel %vm152, %v242, 0.0
  %286 = vadd.xlane.f32.xlu0 %v285
  %v287 = vpop.xlane.xlu0 %286
  %v288 = vsel %vm152, %v244, 0.0
  %289 = vadd.xlane.f32.xlu0 %v288
  %v290 = vpop.xlane.xlu0 %289
  %v291 = vsel %vm152, %v246, 0.0
  %292 = vadd.xlane.f32.xlu0 %v291
  %v293 = vpop.xlane.xlu0 %292
  %v294 = vsel %vm152, %v248, 0.0
  %295 = vadd.xlane.f32.xlu0 %v294
  %v296 = vpop.xlane.xlu0 %295
  %v297 = vsel %vm152, %v250, 0.0
  %298 = vadd.xlane.f32.xlu0 %v297
  %v299 = vpop.xlane.xlu0 %298
  %v300 = vsel %vm152, %v252, 0.0
  %301 = vadd.xlane.f32.xlu0 %v300
  %v302 = vpop.xlane.xlu0 %301
  %v303 = vsel %vm152, %v254, 0.0
  %304 = vadd.xlane.f32.xlu0 %v303
  %v305 = vpop.xlane.xlu0 %304
  %v306 = vsel %vm152, %v256, 0.0
  %307 = vadd.xlane.f32.xlu0 %v306
  %v308 = vpop.xlane.xlu0 %307
  %v309 = vsel %vm152, %v258, 0.0
  %310 = vadd.xlane.f32.xlu0 %v309
  %v311 = vpop.xlane.xlu0 %310
  %v312 = vsel %vm152, %v260, 0.0
  %313 = vadd.xlane.f32.xlu0 %v312
  %v314 = vpop.xlane.xlu0 %313
  %v315 = vsel %vm152, %v262, 0.0
  %316 = vadd.xlane.f32.xlu0 %v315
  %v317 = vpop.xlane.xlu0 %316
  %v318 = vsel %vm152, %v264, 0.0
  %319 = vadd.xlane.f32.xlu0 %v318
  %v320 = vpop.xlane.xlu0 %319
  %v321 = vsel %vm152, %v266, 0.0
  %322 = vadd.xlane.f32.xlu0 %v321
  %v323 = vpop.xlane.xlu0 %322
  %v324 = vsel %vm152, %v268, 0.0
  %325 = vadd.xlane.f32.xlu0 %v324
  %v326 = vpop.xlane.xlu0 %325
  %v327 = vsel %vm152, %v270, 0.0
  %328 = vadd.xlane.f32.xlu0 %v327
  %v329 = vpop.xlane.xlu0 %328
  %v330 = vsel %vm152, %v272, 0.0
  %331 = vadd.xlane.f32.xlu0 %v330
  %v332 = vpop.xlane.xlu0 %331
  %v333 = vmul.f32 %v275, 2.0
  %v334 = vmul.f32 %v278, 2.0
  %v335 = vmul.f32 %v281, 2.0
  %v336 = vmul.f32 %v284, 2.0
  %v337 = vmul.f32 %v287, 2.0
  %v338 = vmul.f32 %v290, 2.0
  %v339 = vmul.f32 %v293, 2.0
  %v340 = vmul.f32 %v296, 2.0
  %v341 = vmul.f32 %v299, 2.0
  %v342 = vmul.f32 %v302, 2.0
  %v343 = vmul.f32 %v305, 2.0
  %v344 = vmul.f32 %v308, 2.0
  %v345 = vmul.f32 %v311, 2.0
  %v346 = vmul.f32 %v314, 2.0
  %v347 = vmul.f32 %v317, 2.0
  %v348 = vmul.f32 %v320, 2.0
  %v349 = vmul.f32 %v323, 2.0
  %v350 = vmul.f32 %v326, 2.0
  %v351 = vmul.f32 %v329, 2.0
  %v352 = vmul.f32 %v332, 2.0
  %v353 = vrcp.pop %v333
  %v354 = vmul.f32 %v234, %v353
  %v355 = vrcp.pop %v334
  %v356 = vmul.f32 %v236, %v355
  %v357 = vrcp.pop %v335
  %v358 = vmul.f32 %v238, %v357
  %v359 = vrcp.pop %v336
  %v360 = vmul.f32 %v240, %v359
  %v361 = vrcp.pop %v337
  %v362 = vmul.f32 %v242, %v361
  %v363 = vrcp.pop %v338
  %v364 = vmul.f32 %v244, %v363
  %v365 = vrcp.pop %v339
  %v366 = vmul.f32 %v246, %v365
  %v367 = vrcp.pop %v340
  %v368 = vmul.f32 %v248, %v367
  %v369 = vrcp.pop %v341
  %v370 = vmul.f32 %v250, %v369
  %v371 = vrcp.pop %v342
  %v372 = vmul.f32 %v252, %v371
  %v373 = vrcp.pop %v343
  %v374 = vmul.f32 %v254, %v373
  %v375 = vrcp.pop %v344
  %v376 = vmul.f32 %v256, %v375
  %v377 = vrcp.pop %v345
  %v378 = vmul.f32 %v258, %v377
  %v379 = vrcp.pop %v346
  %v380 = vmul.f32 %v260, %v379
  %v381 = vrcp.pop %v347
  %v382 = vmul.f32 %v262, %v381
  %v383 = vrcp.pop %v348
  %v384 = vmul.f32 %v264, %v383
  %v385 = vrcp.pop %v349
  %v386 = vmul.f32 %v266, %v385
  %v387 = vrcp.pop %v350
  %v388 = vmul.f32 %v268, %v387
  %v389 = vrcp.pop %v351
  %v390 = vmul.f32 %v270, %v389
  %v391 = vrcp.pop %v352
  %v392 = vmul.f32 %v272, %v391
  %v393 = vlaneseq
  %v394 = vshrl.u32 %v393, 7
  %v395 = vadd.s32 %v394, 8
  %v396 = vlaneseq
  %v397 = vand.u32 %v396, 127
  %v398 = vshra.s32 %v397, 1
  %vm399 = vcmp.eq.s32.totalorder %v394, %v398
  %vm400 = vcmp.eq.s32.totalorder %v395, %v398
  %v401 = vsel %vm399, 1, 0
  %v402 = vsel %vm400, 1, 0
  %v403 = vcvt.s32.f32 %v401
  %v404 = vcvt.s32.f32 %v402
  %v406 = vsel %vm152, %v354, 0
  %v409 = vsel %vm152, %v356, 0
  %v412 = vsel %vm152, %v358, 0
  %v415 = vsel %vm152, %v360, 0
  %v418 = vsel %vm152, %v362, 0
  %v421 = vsel %vm152, %v364, 0
  %v424 = vsel %vm152, %v366, 0
  %v427 = vsel %vm152, %v368, 0
  %v430 = vsel %vm152, %v370, 0
  %v433 = vsel %vm152, %v372, 0
  %v436 = vsel %vm152, %v374, 0
  %v439 = vsel %vm152, %v376, 0
  %v442 = vsel %vm152, %v378, 0
  %v445 = vsel %vm152, %v380, 0
  %v448 = vsel %vm152, %v382, 0
  %v451 = vsel %vm152, %v384, 0
  %v454 = vsel %vm152, %v386, 0
  %v457 = vsel %vm152, %v388, 0
  %v460 = vsel %vm152, %v390, 0
  %v463 = vsel %vm152, %v392, 0
  %465 = vmatprep.subr.mxu0 0.0
  %466 = vmatpush1.msra.mxu0 %v403
  %467 = vmatprep.subr.mxu0 0.0
  %468 = vmatpush1.msra.mxu0 %v404
  %469 = vmatprep.subr.mxu0 0.0
  %470 = vmatpush1.msra.mxu0 0.0
  %471 = vmatprep.subr.mxu0 0.0
  %472 = vmatpush1.msra.mxu0 0.0
  %473 = vmatprep.subr.mxu0 0.0
  %474 = vmatpush1.msra.mxu0 0.0
  %475 = vmatprep.subr.mxu0 0.0
  %476 = vmatpush1.msra.mxu0 0.0
  %477 = vmatprep.subr.mxu0 0.0
  %478 = vmatpush1.msra.mxu0 0.0
  %479 = vmatprep.subr.mxu0 0.0
  %480 = vmatpush1.msra.mxu0 0.0
  %481 = vmatprep.subr.mxu0 0.0
  %482 = vmatpush1.msra.mxu0 0.0
  %483 = vmatprep.subr.mxu0 0.0
  %484 = vmatpush1.msra.mxu0 0.0
  %485 = vmatprep.subr.mxu0 0.0
  %486 = vmatpush1.msra.mxu0 0.0
  %487 = vmatprep.subr.mxu0 0.0
  %488 = vmatpush1.msra.mxu0 0.0
  %489 = vmatprep.subr.mxu0 0.0
  %490 = vmatpush1.msra.mxu0 0.0
  %491 = vmatprep.subr.mxu0 0.0
  %492 = vmatpush1.msra.mxu0 0.0
  %493 = vmatprep.subr.mxu0 0.0
  %494 = vmatpush1.msra.mxu0 0.0
  %495 = vmatprep.subr.mxu0 0.0
  %496 = vmatpush1.msra.mxu0 0.0
  %497 = vmatprep.subr.mxu0 0.0
  %498 = vmatpush1.msra.mxu0 0.0
  %499 = vmatprep.subr.mxu0 0.0
  %500 = vmatpush1.msra.mxu0 0.0
  %501 = vmatprep.subr.mxu0 0.0
  %502 = vmatpush1.msra.mxu0 0.0
  %503 = vmatprep.subr.mxu0 0.0
  %504 = vmatpush1.msra.mxu0 0.0
  %505 = vmatprep.subr.mxu0 0.0
  %506 = vmatpush1.msra.mxu0 0.0
  %507 = vmatprep.subr.mxu0 0.0
  %508 = vmatpush1.msra.mxu0 0.0
  %509 = vmatprep.subr.mxu0 0.0
  %510 = vmatpush1.msra.mxu0 0.0
  %511 = vmatprep.subr.mxu0 0.0
  %512 = vmatpush1.msra.mxu0 0.0
  %513 = vmatprep.subr.mxu0 0.0
  %514 = vmatpush1.msra.mxu0 0.0
  %515 = vmatprep.subr.mxu0 0.0
  %516 = vmatpush1.msra.mxu0 0.0
  %517 = vmatprep.subr.mxu0 0.0
  %518 = vmatpush1.msra.mxu0 0.0
  %519 = vmatprep.subr.mxu0 0.0
  %520 = vmatpush1.msra.mxu0 0.0
  %521 = vmatprep.subr.mxu0 0.0
  %522 = vmatpush1.msra.mxu0 0.0
  %523 = vmatprep.subr.mxu0 0.0
  %524 = vmatpush1.msra.mxu0 0.0
  %525 = vmatprep.subr.mxu0 0.0
  %526 = vmatpush1.msra.mxu0 0.0
  %527 = vmatprep.subr.mxu0 0.0
  %528 = vmatpush1.msra.mxu0 0.0
  %529 = vmatprep.mubr.f32.mxu0 0.0
  %530 = vmatmul.mubr.f32.gmra.mrb[0].mxu0 %v406
  %v531 = vpop.f32.mrb[0].mxu0
  %v532 = vadd.f32 0.0, %v531
  %v533 = vpop.f32.mrb[0].mxu0
  %534 = vmatprep.mubr.f32.mxu0 0.0
  %535 = vmatmul.mubr.f32.gmra.mrb[0].mxu0 %v409
  %v536 = vpop.f32.mrb[0].mxu0
  %v537 = vadd.f32 0.0, %v536
  %v538 = vpop.f32.mrb[0].mxu0
  %539 = vmatprep.mubr.f32.mxu0 0.0
  %540 = vmatmul.mubr.f32.gmra.mrb[0].mxu0 %v412
  %v541 = vpop.f32.mrb[0].mxu0
  %v542 = vadd.f32 0.0, %v541
  %v543 = vpop.f32.mrb[0].mxu0
  %544 = vmatprep.mubr.f32.mxu0 0.0
  %545 = vmatmul.mubr.f32.gmra.mrb[0].mxu0 %v415
  %v546 = vpop.f32.mrb[0].mxu0
  %v547 = vadd.f32 0.0, %v546
  %v548 = vpop.f32.mrb[0].mxu0
  %549 = vmatprep.mubr.f32.mxu0 0.0
  %550 = vmatmul.mubr.f32.gmra.mrb[0].mxu0 %v418
  %v551 = vpop.f32.mrb[0].mxu0
  %v552 = vadd.f32 0.0, %v551
  %v553 = vpop.f32.mrb[0].mxu0
  %554 = vmatprep.mubr.f32.mxu0 0.0
  %555 = vmatmul.mubr.f32.gmra.mrb[0].mxu0 %v421
  %v556 = vpop.f32.mrb[0].mxu0
  %v557 = vadd.f32 0.0, %v556
  %v558 = vpop.f32.mrb[0].mxu0
  %559 = vmatprep.mubr.f32.mxu0 0.0
  %560 = vmatmul.mubr.f32.gmra.mrb[0].mxu0 %v424
  %v561 = vpop.f32.mrb[0].mxu0
  %v562 = vadd.f32 0.0, %v561
  %v563 = vpop.f32.mrb[0].mxu0
  %564 = vmatprep.mubr.f32.mxu0 0.0
  %565 = vmatmul.mubr.f32.gmra.mrb[0].mxu0 %v427
  %v566 = vpop.f32.mrb[0].mxu0
  %v567 = vadd.f32 0.0, %v566
  %v568 = vpop.f32.mrb[0].mxu0
  %569 = vmatprep.mubr.f32.mxu0 0.0
  %570 = vmatmul.mubr.f32.gmra.mrb[0].mxu0 %v430
  %v571 = vpop.f32.mrb[0].mxu0
  %v572 = vadd.f32 0.0, %v571
  %v573 = vpop.f32.mrb[0].mxu0
  %574 = vmatprep.mubr.f32.mxu0 0.0
  %575 = vmatmul.mubr.f32.gmra.mrb[0].mxu0 %v433
  %v576 = vpop.f32.mrb[0].mxu0
  %v577 = vadd.f32 0.0, %v576
  %v578 = vpop.f32.mrb[0].mxu0
  %579 = vmatprep.mubr.f32.mxu0 0.0
  %580 = vmatmul.mubr.f32.gmra.mrb[0].mxu0 %v436
  %v581 = vpop.f32.mrb[0].mxu0
  %v582 = vadd.f32 0.0, %v581
  %v583 = vpop.f32.mrb[0].mxu0
  %584 = vmatprep.mubr.f32.mxu0 0.0
  %585 = vmatmul.mubr.f32.gmra.mrb[0].mxu0 %v439
  %v586 = vpop.f32.mrb[0].mxu0
  %v587 = vadd.f32 0.0, %v586
  %v588 = vpop.f32.mrb[0].mxu0
  %589 = vmatprep.mubr.f32.mxu0 0.0
  %590 = vmatmul.mubr.f32.gmra.mrb[0].mxu0 %v442
  %v591 = vpop.f32.mrb[0].mxu0
  %v592 = vadd.f32 0.0, %v591
  %v593 = vpop.f32.mrb[0].mxu0
  %594 = vmatprep.mubr.f32.mxu0 0.0
  %595 = vmatmul.mubr.f32.gmra.mrb[0].mxu0 %v445
  %v596 = vpop.f32.mrb[0].mxu0
  %v597 = vadd.f32 0.0, %v596
  %v598 = vpop.f32.mrb[0].mxu0
  %599 = vmatprep.mubr.f32.mxu0 0.0
  %600 = vmatmul.mubr.f32.gmra.mrb[0].mxu0 %v448
  %v601 = vpop.f32.mrb[0].mxu0
  %v602 = vadd.f32 0.0, %v601
  %v603 = vpop.f32.mrb[0].mxu0
  %604 = vmatprep.mubr.f32.mxu0 0.0
  %605 = vmatmul.mubr.f32.gmra.mrb[0].mxu0 %v451
  %v606 = vpop.f32.mrb[0].mxu0
  %v607 = vadd.f32 0.0, %v606
  %v608 = vpop.f32.mrb[0].mxu0
  %609 = vmatprep.mubr.f32.mxu0 0.0
  %610 = vmatmul.mubr.f32.gmra.mrb[0].mxu0 %v454
  %v611 = vpop.f32.mrb[0].mxu0
  %v612 = vadd.f32 0.0, %v611
  %v613 = vpop.f32.mrb[0].mxu0
  %614 = vmatprep.mubr.f32.mxu0 0.0
  %615 = vmatmul.mubr.f32.gmra.mrb[0].mxu0 %v457
  %v616 = vpop.f32.mrb[0].mxu0
  %v617 = vadd.f32 0.0, %v616
  %v618 = vpop.f32.mrb[0].mxu0
  %619 = vmatprep.mubr.f32.mxu0 0.0
  %620 = vmatmul.mubr.f32.gmra.mrb[0].mxu0 %v460
  %v621 = vpop.f32.mrb[0].mxu0
  %v622 = vadd.f32 0.0, %v621
  %v623 = vpop.f32.mrb[0].mxu0
  %624 = vmatprep.mubr.f32.mxu0 0.0
  %625 = vmatmul.mubr.f32.gmra.mrb[0].mxu0 %v463
  %v626 = vpop.f32.mrb[0].mxu0
  %v627 = vadd.f32 0.0, %v626
  %v628 = vpop.f32.mrb[0].mxu0
  %629 = vdwg.mxu0
  %650 = vrot.lane.b32.xlu0 %v532, 2
  %v651 = vpop.permute.xlu0 %650
  %652 = vrot.lane.b32.xlu0 %v537, 2
  %v653 = vpop.permute.xlu0 %652
  %654 = vrot.lane.b32.xlu0 %v542, 2
  %v655 = vpop.permute.xlu0 %654
  %656 = vrot.lane.b32.xlu0 %v547, 2
  %v657 = vpop.permute.xlu0 %656
  %658 = vrot.lane.b32.xlu0 %v552, 2
  %v659 = vpop.permute.xlu0 %658
  %660 = vrot.lane.b32.xlu0 %v557, 2
  %v661 = vpop.permute.xlu0 %660
  %662 = vrot.lane.b32.xlu0 %v562, 2
  %v663 = vpop.permute.xlu0 %662
  %664 = vrot.lane.b32.xlu0 %v567, 2
  %v665 = vpop.permute.xlu0 %664
  %666 = vrot.lane.b32.xlu0 %v572, 2
  %v667 = vpop.permute.xlu0 %666
  %668 = vrot.lane.b32.xlu0 %v577, 2
  %v669 = vpop.permute.xlu0 %668
  %670 = vrot.lane.b32.xlu0 %v582, 2
  %v671 = vpop.permute.xlu0 %670
  %672 = vrot.lane.b32.xlu0 %v587, 2
  %v673 = vpop.permute.xlu0 %672
  %674 = vrot.lane.b32.xlu0 %v592, 2
  %v675 = vpop.permute.xlu0 %674
  %676 = vrot.lane.b32.xlu0 %v597, 2
  %v677 = vpop.permute.xlu0 %676
  %678 = vrot.lane.b32.xlu0 %v602, 2
  %v679 = vpop.permute.xlu0 %678
  %680 = vrot.lane.b32.xlu0 %v607, 2
  %v681 = vpop.permute.xlu0 %680
  %682 = vrot.lane.b32.xlu0 %v612, 2
  %v683 = vpop.permute.xlu0 %682
  %684 = vrot.lane.b32.xlu0 %v617, 2
  %v685 = vpop.permute.xlu0 %684
  %686 = vrot.lane.b32.xlu0 %v622, 2
  %v687 = vpop.permute.xlu0 %686
  %688 = vrot.lane.b32.xlu0 %v627, 2
  %v689 = vpop.permute.xlu0 %688
  %vm710 = vcmask 15360
  %v711 = vsel %vm710, 0.0, %v651
  %v712 = vsel %vm710, 0.0, %v653
  %v713 = vsel %vm710, 0.0, %v655
  %v714 = vsel %vm710, 0.0, %v657
  %v715 = vsel %vm710, 0.0, %v659
  %v716 = vsel %vm710, 0.0, %v661
  %v717 = vsel %vm710, 0.0, %v663
  %v718 = vsel %vm710, 0.0, %v665
  %v719 = vsel %vm710, 0.0, %v667
  %v720 = vsel %vm710, 0.0, %v669
  %v721 = vsel %vm710, 0.0, %v671
  %v722 = vsel %vm710, 0.0, %v673
  %v723 = vsel %vm710, 0.0, %v675
  %v724 = vsel %vm710, 0.0, %v677
  %v725 = vsel %vm710, 0.0, %v679
  %v726 = vsel %vm710, 0.0, %v681
  %v727 = vsel %vm710, 0.0, %v683
  %v728 = vsel %vm710, 0.0, %v685
  %v729 = vsel %vm710, 0.0, %v687
  %v730 = vsel %vm710, 0.0, %v689
  %vm731 = vcmask 277504
  %v732 = vsel %vm731, %v711, 0.0
  %v733 = vsel %vm731, %v712, 0.0
  %v734 = vsel %vm731, %v713, 0.0
  %v735 = vsel %vm731, %v714, 0.0
  %v736 = vsel %vm731, %v715, 0.0
  %v737 = vsel %vm731, %v716, 0.0
  %v738 = vsel %vm731, %v717, 0.0
  %v739 = vsel %vm731, %v718, 0.0
  %v740 = vsel %vm731, %v719, 0.0
  %v741 = vsel %vm731, %v720, 0.0
  %v742 = vsel %vm731, %v721, 0.0
  %v743 = vsel %vm731, %v722, 0.0
  %v744 = vsel %vm731, %v723, 0.0
  %v745 = vsel %vm731, %v724, 0.0
  %v746 = vsel %vm731, %v725, 0.0
  %v747 = vsel %vm731, %v726, 0.0
  %v748 = vsel %vm731, %v727, 0.0
  %v749 = vsel %vm731, %v728, 0.0
  %v750 = vsel %vm731, %v729, 0.0
  %v751 = vsel %vm731, %v730, 0.0
  %752 = vrot.lane.b32.xlu0 %v532, 1
  %v753 = vpop.permute.xlu0 %752
  %754 = vrot.lane.b32.xlu0 %v537, 1
  %v755 = vpop.permute.xlu0 %754
  %756 = vrot.lane.b32.xlu0 %v542, 1
  %v757 = vpop.permute.xlu0 %756
  %758 = vrot.lane.b32.xlu0 %v547, 1
  %v759 = vpop.permute.xlu0 %758
  %760 = vrot.lane.b32.xlu0 %v552, 1
  %v761 = vpop.permute.xlu0 %760
  %762 = vrot.lane.b32.xlu0 %v557, 1
  %v763 = vpop.permute.xlu0 %762
  %764 = vrot.lane.b32.xlu0 %v562, 1
  %v765 = vpop.permute.xlu0 %764
  %766 = vrot.lane.b32.xlu0 %v567, 1
  %v767 = vpop.permute.xlu0 %766
  %768 = vrot.lane.b32.xlu0 %v572, 1
  %v769 = vpop.permute.xlu0 %768
  %770 = vrot.lane.b32.xlu0 %v577, 1
  %v771 = vpop.permute.xlu0 %770
  %772 = vrot.lane.b32.xlu0 %v582, 1
  %v773 = vpop.permute.xlu0 %772
  %774 = vrot.lane.b32.xlu0 %v587, 1
  %v775 = vpop.permute.xlu0 %774
  %776 = vrot.lane.b32.xlu0 %v592, 1
  %v777 = vpop.permute.xlu0 %776
  %778 = vrot.lane.b32.xlu0 %v597, 1
  %v779 = vpop.permute.xlu0 %778
  %780 = vrot.lane.b32.xlu0 %v602, 1
  %v781 = vpop.permute.xlu0 %780
  %782 = vrot.lane.b32.xlu0 %v607, 1
  %v783 = vpop.permute.xlu0 %782
  %784 = vrot.lane.b32.xlu0 %v612, 1
  %v785 = vpop.permute.xlu0 %784
  %786 = vrot.lane.b32.xlu0 %v617, 1
  %v787 = vpop.permute.xlu0 %786
  %788 = vrot.lane.b32.xlu0 %v622, 1
  %v789 = vpop.permute.xlu0 %788
  %790 = vrot.lane.b32.xlu0 %v627, 1
  %v791 = vpop.permute.xlu0 %790
  %vm812 = vcmask 7168
  %v813 = vsel %vm812, 0.0, %v753
  %v814 = vsel %vm812, 0.0, %v755
  %v815 = vsel %vm812, 0.0, %v757
  %v816 = vsel %vm812, 0.0, %v759
  %v817 = vsel %vm812, 0.0, %v761
  %v818 = vsel %vm812, 0.0, %v763
  %v819 = vsel %vm812, 0.0, %v765
  %v820 = vsel %vm812, 0.0, %v767
  %v821 = vsel %vm812, 0.0, %v769
  %v822 = vsel %vm812, 0.0, %v771
  %v823 = vsel %vm812, 0.0, %v773
  %v824 = vsel %vm812, 0.0, %v775
  %v825 = vsel %vm812, 0.0, %v777
  %v826 = vsel %vm812, 0.0, %v779
  %v827 = vsel %vm812, 0.0, %v781
  %v828 = vsel %vm812, 0.0, %v783
  %v829 = vsel %vm812, 0.0, %v785
  %v830 = vsel %vm812, 0.0, %v787
  %v831 = vsel %vm812, 0.0, %v789
  %v832 = vsel %vm812, 0.0, %v791
  %vm833 = vcmask 269312
  %v834 = vsel %vm833, %v813, 0.0
  %v835 = vsel %vm833, %v814, 0.0
  %v836 = vsel %vm833, %v815, 0.0
  %v837 = vsel %vm833, %v816, 0.0
  %v838 = vsel %vm833, %v817, 0.0
  %v839 = vsel %vm833, %v818, 0.0
  %v840 = vsel %vm833, %v819, 0.0
  %v841 = vsel %vm833, %v820, 0.0
  %v842 = vsel %vm833, %v821, 0.0
  %v843 = vsel %vm833, %v822, 0.0
  %v844 = vsel %vm833, %v823, 0.0
  %v845 = vsel %vm833, %v824, 0.0
  %v846 = vsel %vm833, %v825, 0.0
  %v847 = vsel %vm833, %v826, 0.0
  %v848 = vsel %vm833, %v827, 0.0
  %v849 = vsel %vm833, %v828, 0.0
  %v850 = vsel %vm833, %v829, 0.0
  %v851 = vsel %vm833, %v830, 0.0
  %v852 = vsel %vm833, %v831, 0.0
  %v853 = vsel %vm833, %v832, 0.0
  %v854 = vmax.f32 %v732, %v834
  %v855 = vmax.f32 %v733, %v835
  %v856 = vmax.f32 %v734, %v836
  %v857 = vmax.f32 %v735, %v837
  %v858 = vmax.f32 %v736, %v838
  %v859 = vmax.f32 %v737, %v839
  %v860 = vmax.f32 %v738, %v840
  %v861 = vmax.f32 %v739, %v841
  %v862 = vmax.f32 %v740, %v842
  %v863 = vmax.f32 %v741, %v843
  %v864 = vmax.f32 %v742, %v844
  %v865 = vmax.f32 %v743, %v845
  %v866 = vmax.f32 %v744, %v846
  %v867 = vmax.f32 %v745, %v847
  %v868 = vmax.f32 %v746, %v848
  %v869 = vmax.f32 %v747, %v849
  %v870 = vmax.f32 %v748, %v850
  %v871 = vmax.f32 %v749, %v851
  %v872 = vmax.f32 %v750, %v852
  %v873 = vmax.f32 %v751, %v853
  %vm874 = vcmask 285696
  %875 = vst.msk [vmem:[%s2] sm:$0xff] %vm874, %v854
  %876 = vst.msk [vmem:[%s2 + $0x8] sm:$0xff] %vm874, %v855
  %877 = vst.msk [vmem:[%s2 + $0x10] sm:$0xff] %vm874, %v856
  %878 = vst.msk [vmem:[%s2 + $0x18] sm:$0xff] %vm874, %v857
  %879 = vst.msk [vmem:[%s2 + $0x20] sm:$0xff] %vm874, %v858
  %880 = vst.msk [vmem:[%s2 + $0x28] sm:$0xff] %vm874, %v859
  %881 = vst.msk [vmem:[%s2 + $0x30] sm:$0xff] %vm874, %v860
  %882 = vst.msk [vmem:[%s2 + $0x38] sm:$0xff] %vm874, %v861
  %883 = vst.msk [vmem:[%s2 + $0x40] sm:$0xff] %vm874, %v862
  %884 = vst.msk [vmem:[%s2 + $0x48] sm:$0xff] %vm874, %v863
  %885 = vst.msk [vmem:[%s2 + $0x50] sm:$0xff] %vm874, %v864
  %886 = vst.msk [vmem:[%s2 + $0x58] sm:$0xff] %vm874, %v865
  %887 = vst.msk [vmem:[%s2 + $0x60] sm:$0xff] %vm874, %v866
  %888 = vst.msk [vmem:[%s2 + $0x68] sm:$0xff] %vm874, %v867
  %889 = vst.msk [vmem:[%s2 + $0x70] sm:$0xff] %vm874, %v868
  %890 = vst.msk [vmem:[%s2 + $0x78] sm:$0xff] %vm874, %v869
  %891 = vst.msk [vmem:[%s2 + $0x80] sm:$0xff] %vm874, %v870
  %892 = vst.msk [vmem:[%s2 + $0x88] sm:$0xff] %vm874, %v871
  %893 = vst.msk [vmem:[%s2 + $0x90] sm:$0xff] %vm874, %v872
  %894 = vst.msk [vmem:[%s2 + $0x98] sm:$0xff] %vm874, %v873
  // Predicated region
  $region10: #{model_forward.1} parent=0 // pred_check
    _
  $region11: #{model_forward.1} parent=0 // pred_check_branch
    %896 = sbr.rel (0) target = $region13
  $region12: #{model_forward.1} parent=0 // pred_region
    _
  $region13: #{model_forward.1} parent=0 // pred_fallthru
    _
  // Predicated region
  $region14: #{model_forward.1} parent=0 // pred_check
    _
  $region15: #{model_forward.1} parent=0 // pred_check_branch
    %898 = sbr.rel (0) target = $region17
  $region16: #{model_forward.1} parent=0 // pred_region
    _
  $region17: #{model_forward.1} parent=0 // pred_fallthru
    _

</llo_original>
